<compile_context>
chip_gen: v7x
topology: tpu7x:2x2x1
jax: 0.10.0
libtpu: 0.0.40
codegen_flags: <defaults>
</compile_context>

<pallas_src>
import functools

import jax
import jax.numpy as jnp
from jax.experimental import pallas as pl
from jax.experimental.pallas import tpu as pltpu


LN_EPS = 1e-6  # matches nn.LayerNorm(hid_dim, eps=1e-06)


def _round_up(x, m):
    return ((x + m - 1) // m) * m


def _vmem_capacity_bytes():
    try:
        return int(pltpu.get_tpu_info().vmem_capacity_bytes)
    except Exception:
        return 128 << 20  # v5e/v6e default


def projection_kernel(x_ref, w1_ref, b1_ref, w2_ref, b2_ref, o_ref, *,
                      h_real, inv_h, eps, compute_dtype):
    # fc1 on the MXU, f32 accumulation; x is cast in-kernel (no wrapper copy).
    xb = x_ref[...].astype(compute_dtype)
    h = jnp.dot(xb, w1_ref[...], preferred_element_type=jnp.float32)
    h = jnp.maximum(h + b1_ref[...], 0.0)          # ReLU; padded lanes stay exactly 0

    # LayerNorm over the ORIGINAL hid_dim (torch biased variance), two-pass for
    # numerical stability. Padded lanes (if any) are masked out of the sums.
    mean = jnp.sum(h, axis=-1, keepdims=True) * inv_h
    diff = h - mean
    if h.shape[-1] != h_real:
        lane = jax.lax.broadcasted_iota(jnp.int32, h.shape, 1)
        diff = jnp.where(lane < h_real, diff, 0.0)
    var = jnp.sum(diff * diff, axis=-1, keepdims=True) * inv_h
    h_norm = diff * jax.lax.rsqrt(var + eps)
    # gamma/beta are already folded into w2/b2 (exactly equivalent math).

    # fc2: padded rows of w2 are zero, so padded lanes of h_norm cannot leak.
    out = jnp.dot(h_norm.astype(compute_dtype), w2_ref[...],
                  preferred_element_type=jnp.float32)
    out = out + b2_ref[...]
    o_ref[...] = out[:, :h_real].astype(o_ref.dtype)


def prepare_projection_params(w1, b1, w2, b2, gamma, beta, *,
                              compute_dtype=jnp.bfloat16):
    """One-time (hoisted out of the forward path) weight preparation:
    fold the LayerNorm affine into fc2, pad H to a lane-dense multiple of 128,
    and cast the matmul operands to the compute dtype."""
    d_in, h = w1.shape
    h_pad = _round_up(h, 128)

    w1 = w1.astype(jnp.float32)
    w2 = w2.astype(jnp.float32)
    gamma = gamma.astype(jnp.float32).reshape(1, h)
    beta = beta.astype(jnp.float32).reshape(1, h)
    b1 = b1.astype(jnp.float32).reshape(1, h)
    b2 = b2.astype(jnp.float32).reshape(1, h)

    # (x_norm * gamma + beta) @ w2 + b2  ==  x_norm @ (gamma[:,None]*w2) + (beta@w2 + b2)
    w2_fold = gamma.reshape(h, 1) * w2
    b2_fold = beta @ w2 + b2

    return dict(
        w1=jnp.pad(w1, ((0, 0), (0, h_pad - h))).astype(compute_dtype),
        b1=jnp.pad(b1, ((0, 0), (0, h_pad - h))),                 # f32
        w2=jnp.pad(w2_fold, ((0, h_pad - h), (0, h_pad - h))).astype(compute_dtype),
        b2=jnp.pad(b2_fold, ((0, 0), (0, h_pad - h))),            # f32
        hid_dim=h,
        compute_dtype=jnp.dtype(compute_dtype),
    )


def projection_forward(x, params, *, tm=None):
    """x: [N, D_in] (any float dtype); params: output of prepare_projection_params."""
    N, d_in = x.shape
    H = params["hid_dim"]
    compute_dtype = params["compute_dtype"]
    w1_p, b1_p, w2_p, b2_p = params["w1"], params["b1"], params["w2"], params["b2"]
    assert w1_p.shape[0] == d_in, "x feature dim does not match prepared weights"
    h_pad = w1_p.shape[1]

    cap = _vmem_capacity_bytes()
    sub = 16 if compute_dtype.itemsize < 4 else 8    # bf16 native sublane tile is 16

    # Row tile: big on v5e/v6e (128 MiB VMEM), smaller on v7x (64 MiB, 2 TCs).
    if tm is None:
        tm = 512 if cap > (64 << 20) else 256
    tm_eff = min(_round_up(tm, sub), _round_up(N, sub))
    if cap <= (64 << 20) and N > sub and pl.cdiv(N, tm_eff) < 2:
        # v7x: give both TensorCores a grid step when N is small.
        tm_eff = _round_up((N + 1) // 2, sub)
    grid = (pl.cdiv(N, tm_eff),)

    out_dtype = x.dtype
    kernel = functools.partial(projection_kernel, h_real=H, inv_h=1.0 / H,
                               eps=LN_EPS, compute_dtype=compute_dtype)

    # VMEM budget: single-buffered resident weights + double-buffered row tiles
    # + f32 intermediates; generation-aware clamp (~56 MiB v7x, ~104 MiB v5e/v6e).
    c_item = compute_dtype.itemsize
    est = (2 * tm_eff * d_in * x.dtype.itemsize            # x tiles (double-buffered)
           + 2 * tm_eff * H * jnp.dtype(out_dtype).itemsize  # out tiles
           + (d_in * h_pad + h_pad * h_pad) * c_item         # weights (single-buffered)
           + 4 * h_pad * 4                                    # biases
           + 4 * tm_eff * h_pad * 4)                          # f32 intermediates
    clamp = (56 << 20) if cap <= (64 << 20) else (104 << 20)
    vmem_limit = int(min(max(est + (4 << 20), 32 << 20), clamp))

    def run(single_buffer_weights):
        def weight_spec(shape):
            if single_buffer_weights:
                return pl.BlockSpec(shape, lambda i: (0, 0),
                                    pipeline_mode=pl.Buffered(1))
            return pl.BlockSpec(shape, lambda i: (0, 0))

        return pl.pallas_call(
            kernel,
            out_shape=jax.ShapeDtypeStruct((N, H), out_dtype),
            grid_spec=pltpu.PrefetchScalarGridSpec(
                num_scalar_prefetch=0,
                grid=grid,
                in_specs=[
                    pl.BlockSpec((tm_eff, d_in), lambda i: (i, 0)),  # x row tile (unpadded)
                    weight_spec((d_in, h_pad)),                      # w1 (resident)
                    weight_spec((1, h_pad)),                         # b1
                    weight_spec((h_pad, h_pad)),                     # w2 (gamma-folded)
                    weight_spec((1, h_pad)),                         # b2 (beta-folded)
                ],
                out_specs=pl.BlockSpec((tm_eff, H), lambda i: (i, 0)),
            ),
            compiler_params=pltpu.CompilerParams(
                dimension_semantics=("parallel",),
                vmem_limit_bytes=vmem_limit,
            ),
        )(x, w1_p, b1_p, w2_p, b2_p)

    try:
        return run(True)
    except Exception:
        # pipeline_mode=pl.Buffered(1) unsupported on this jax/libtpu build:
        # fall back to default double-buffered weight specs.
        return run(False)


# ----------------------------------------------------------------------------
# Reference / parameter init (matches the PyTorch module's _init_weights)
# ----------------------------------------------------------------------------
def xavier_uniform(key, fan_in, fan_out, dtype=jnp.float32):
    bound = (6.0 / (fan_in + fan_out)) ** 0.5
    return jax.random.uniform(key, (fan_in, fan_out), dtype, minval=-bound, maxval=bound)


def make_params(key, input_dim, hid_dim):
    k1, k2, k3, k4 = jax.random.split(key, 4)
    w1 = xavier_uniform(k1, input_dim, hid_dim)               # stored [in, out]
    w2 = xavier_uniform(k2, hid_dim, hid_dim)
    b1 = 1e-6 * jax.random.normal(k3, (1, hid_dim), jnp.float32)
    b2 = 1e-6 * jax.random.normal(k4, (1, hid_dim), jnp.float32)
    gamma = jnp.ones((1, hid_dim), jnp.float32)               # LayerNorm affine init
    beta = jnp.zeros((1, hid_dim), jnp.float32)
    return w1, b1, w2, b2, gamma, beta


def projection_ref(x, w1, b1, w2, b2, gamma, beta):
    h = x @ w1 + b1
    h = jnp.maximum(h, 0.0)
    mean = jnp.mean(h, axis=-1, keepdims=True)
    var = jnp.mean((h - mean) ** 2, axis=-1, keepdims=True)
    h = (h - mean) / jnp.sqrt(var + LN_EPS)
    h = h * gamma + beta
    return h @ w2 + b2


if __name__ == "__main__":
    N, input_dim, hid_dim = 16, 16, 32
    key = jax.random.PRNGKey(0)
    kx, kp = jax.random.split(key)
    x = jax.random.normal(kx, (N, input_dim), jnp.float32)
    w1, b1, w2, b2, gamma, beta = make_params(kp, input_dim, hid_dim)

    ref = projection_ref(x, w1, b1, w2, b2, gamma, beta)

    # f32 compute path: tight tolerance vs the JAX reference.
    params_f32 = prepare_projection_params(w1, b1, w2, b2, gamma, beta,
                                           compute_dtype=jnp.float32)
    out_f32 = jax.block_until_ready(projection_forward(x, params_f32))
    assert out_f32.shape == (N, hid_dim)
    assert jnp.allclose(out_f32, ref, atol=1e-4, rtol=1e-4), "f32 mismatch vs reference"

    # Default bf16 matmul-input path (f32 accumulation + f32 LN): loose tolerance.
    params_bf16 = prepare_projection_params(w1, b1, w2, b2, gamma, beta,
                                            compute_dtype=jnp.bfloat16)
    out_bf16 = jax.block_until_ready(projection_forward(x, params_bf16))
    assert out_bf16.shape == (N, hid_dim)
    assert jnp.allclose(out_bf16, ref, atol=5e-2, rtol=5e-2), "bf16 mismatch vs reference"

    print("KERNEL_OK")
</pallas_src>

<mosaic_0001>
module attributes {stable_mosaic.version = 11 : i64} {
  func.func @projection_kernel(%arg0: i32, %arg1: memref<16x16xf32, #tpu.memory_space<vmem>>, %arg2: memref<16x128xf32, #tpu.memory_space<vmem>>, %arg3: memref<1x128xf32, #tpu.memory_space<vmem>>, %arg4: memref<128x128xf32, #tpu.memory_space<vmem>>, %arg5: memref<1x128xf32, #tpu.memory_space<vmem>>, %arg6: memref<16x32xf32, #tpu.memory_space<vmem>>) attributes {dimension_semantics = [#tpu.dimension_semantics<parallel>], iteration_bounds = array<i64: 1>, scalar_prefetch = 0 : i64, scratch_operands = 0 : i64, tpu.core_type = #tpu.core_type<tc>, window_params = [{transform_indices = @transform_0, window_bounds = array<i64: 16, 16>}, {pipeline_mode = #tpu.pipeline_mode<synchronous>, transform_indices = @transform_1, window_bounds = array<i64: 16, 128>}, {pipeline_mode = #tpu.pipeline_mode<synchronous>, transform_indices = @transform_2, window_bounds = array<i64: 1, 128>}, {pipeline_mode = #tpu.pipeline_mode<synchronous>, transform_indices = @transform_3, window_bounds = array<i64: 128, 128>}, {pipeline_mode = #tpu.pipeline_mode<synchronous>, transform_indices = @transform_4, window_bounds = array<i64: 1, 128>}, {transform_indices = @transform_5, window_bounds = array<i64: 16, 32>}]} {
    %c0 = arith.constant 0 : index
    %c0_0 = arith.constant 0 : index
    %0 = vector.load %arg1[%c0, %c0_0] : memref<16x16xf32, #tpu.memory_space<vmem>>, vector<16x16xf32>
    %c0_1 = arith.constant 0 : index
    %c0_2 = arith.constant 0 : index
    %1 = vector.load %arg2[%c0_1, %c0_2] : memref<16x128xf32, #tpu.memory_space<vmem>>, vector<16x128xf32>
    %cst = arith.constant dense<0.000000e+00> : vector<16x128xf32>
    %2 = tpu.matmul %0, %1, %cst {dimension_numbers = #tpu.dot_dimension_numbers<[1], [0], [0], [1], [0, 0, 1, 1], [], []>} : vector<16x16xf32>, vector<16x128xf32>, vector<16x128xf32> -> vector<16x128xf32>
    %c0_3 = arith.constant 0 : index
    %c0_4 = arith.constant 0 : index
    %3 = vector.load %arg3[%c0_3, %c0_4] : memref<1x128xf32, #tpu.memory_space<vmem>>, vector<1x128xf32>
    %4 = vector.broadcast %3 : vector<1x128xf32> to vector<16x128xf32>
    %5 = arith.addf %2, %4 : vector<16x128xf32>
    %cst_5 = arith.constant 0.000000e+00 : f32
    %6 = vector.broadcast %cst_5 : f32 to vector<16x128xf32>
    %7 = arith.maximumf %5, %6 : vector<16x128xf32>
    %cst_6 = arith.constant dense<0.000000e+00> : vector<16xf32>
    %8 = vector.multi_reduction <add>, %7, %cst_6 [1] : vector<16x128xf32> to vector<16xf32>
    %9 = vector.shape_cast %8 : vector<16xf32> to vector<16x1xf32>
    %cst_7 = arith.constant 3.125000e-02 : f32
    %10 = vector.broadcast %cst_7 : f32 to vector<16x1xf32>
    %11 = arith.mulf %9, %10 : vector<16x1xf32>
    %12 = vector.broadcast %11 : vector<16x1xf32> to vector<16x128xf32>
    %13 = arith.subf %7, %12 : vector<16x128xf32>
    %14 = tpu.iota {dimensions = array<i32: 1>} : vector<16x128xi32>
    %c32_i32 = arith.constant 32 : i32
    %15 = vector.broadcast %c32_i32 : i32 to vector<16x128xi32>
    %16 = arith.cmpi slt, %14, %15 : vector<16x128xi32>
    %cst_8 = arith.constant 0.000000e+00 : f32
    %17 = vector.broadcast %cst_8 : f32 to vector<16x128xf32>
    %18 = arith.select %16, %13, %17 : vector<16x128xi1>, vector<16x128xf32>
    %19 = arith.mulf %18, %18 : vector<16x128xf32>
    %cst_9 = arith.constant dense<0.000000e+00> : vector<16xf32>
    %20 = vector.multi_reduction <add>, %19, %cst_9 [1] : vector<16x128xf32> to vector<16xf32>
    %21 = vector.shape_cast %20 : vector<16xf32> to vector<16x1xf32>
    %cst_10 = arith.constant 3.125000e-02 : f32
    %22 = vector.broadcast %cst_10 : f32 to vector<16x1xf32>
    %23 = arith.mulf %21, %22 : vector<16x1xf32>
    %cst_11 = arith.constant 9.99999997E-7 : f32
    %24 = vector.broadcast %cst_11 : f32 to vector<16x1xf32>
    %25 = arith.addf %23, %24 : vector<16x1xf32>
    %26 = math.rsqrt %25 : vector<16x1xf32>
    %27 = vector.broadcast %26 : vector<16x1xf32> to vector<16x128xf32>
    %28 = arith.mulf %18, %27 : vector<16x128xf32>
    %c0_12 = arith.constant 0 : index
    %c0_13 = arith.constant 0 : index
    %29 = vector.load %arg4[%c0_12, %c0_13] : memref<128x128xf32, #tpu.memory_space<vmem>>, vector<128x128xf32>
    %cst_14 = arith.constant dense<0.000000e+00> : vector<16x128xf32>
    %30 = tpu.matmul %28, %29, %cst_14 {dimension_numbers = #tpu.dot_dimension_numbers<[1], [0], [0], [1], [0, 0, 1, 1], [], []>} : vector<16x128xf32>, vector<128x128xf32>, vector<16x128xf32> -> vector<16x128xf32>
    %c0_15 = arith.constant 0 : index
    %c0_16 = arith.constant 0 : index
    %31 = vector.load %arg5[%c0_15, %c0_16] : memref<1x128xf32, #tpu.memory_space<vmem>>, vector<1x128xf32>
    %32 = vector.broadcast %31 : vector<1x128xf32> to vector<16x128xf32>
    %33 = arith.addf %30, %32 : vector<16x128xf32>
    %34 = vector.extract_strided_slice %33 {offsets = [0, 0], sizes = [16, 32], strides = [1, 1]} : vector<16x128xf32> to vector<16x32xf32>
    %c0_17 = arith.constant 0 : index
    %c0_18 = arith.constant 0 : index
    %35 = vector.load %arg6[%c0_17, %c0_18] : memref<16x32xf32, #tpu.memory_space<vmem>>, vector<16x32xf32>
    tpu.vector_store %arg6[%c0_17, %c0_18], %34 {strides = array<i32>} : memref<16x32xf32, #tpu.memory_space<vmem>>, vector<16x32xf32>,
    return
  }
  func.func @transform_0(%arg0: i32) -> (i32, i32) {
    %c0_i32 = arith.constant 0 : i32
    %c0_i32_0 = arith.constant 0 : i32
    return %arg0, %c0_i32 : i32, i32
  }
  func.func @transform_1(%arg0: i32) -> (i32, i32) {
    %c0_i32 = arith.constant 0 : i32
    %c0_i32_0 = arith.constant 0 : i32
    %c0_i32_1 = arith.constant 0 : i32
    return %c0_i32, %c0_i32_0 : i32, i32
  }
  func.func @transform_2(%arg0: i32) -> (i32, i32) {
    %c0_i32 = arith.constant 0 : i32
    %c0_i32_0 = arith.constant 0 : i32
    %c0_i32_1 = arith.constant 0 : i32
    return %c0_i32, %c0_i32_0 : i32, i32
  }
  func.func @transform_3(%arg0: i32) -> (i32, i32) {
    %c0_i32 = arith.constant 0 : i32
    %c0_i32_0 = arith.constant 0 : i32
    %c0_i32_1 = arith.constant 0 : i32
    return %c0_i32, %c0_i32_0 : i32, i32
  }
  func.func @transform_4(%arg0: i32) -> (i32, i32) {
    %c0_i32 = arith.constant 0 : i32
    %c0_i32_0 = arith.constant 0 : i32
    %c0_i32_1 = arith.constant 0 : i32
    return %c0_i32, %c0_i32_0 : i32, i32
  }
  func.func @transform_5(%arg0: i32) -> (i32, i32) {
    %c0_i32 = arith.constant 0 : i32
    %c0_i32_0 = arith.constant 0 : i32
    return %arg0, %c0_i32 : i32, i32
  }
}

module attributes {stable_mosaic.version = 11 : i64} {
  func.func @projection_kernel(%arg0: i32, %arg1: memref<16x16xf32, #tpu.memory_space<vmem>>, %arg2: memref<16x128xf32, #tpu.memory_space<vmem>>, %arg3: memref<1x128xf32, #tpu.memory_space<vmem>>, %arg4: memref<128x128xf32, #tpu.memory_space<vmem>>, %arg5: memref<1x128xf32, #tpu.memory_space<vmem>>, %arg6: memref<16x32xf32, #tpu.memory_space<vmem>>) attributes {dimension_semantics = [#tpu.dimension_semantics<parallel>], iteration_bounds = array<i64: 1>, scalar_prefetch = 0 : i64, scratch_operands = 0 : i64, tpu.core_type = #tpu.core_type<tc>, window_params = [{transform_indices = @transform_0, window_bounds = array<i64: 16, 16>}, {pipeline_mode = #tpu.pipeline_mode<synchronous>, transform_indices = @transform_1, window_bounds = array<i64: 16, 128>}, {pipeline_mode = #tpu.pipeline_mode<synchronous>, transform_indices = @transform_2, window_bounds = array<i64: 1, 128>}, {pipeline_mode = #tpu.pipeline_mode<synchronous>, transform_indices = @transform_3, window_bounds = array<i64: 128, 128>}, {pipeline_mode = #tpu.pipeline_mode<synchronous>, transform_indices = @transform_4, window_bounds = array<i64: 1, 128>}, {transform_indices = @transform_5, window_bounds = array<i64: 16, 32>}]} {
    %c0 = arith.constant 0 : index
    %c0_0 = arith.constant 0 : index
    %0 = vector.load %arg1[%c0, %c0_0] : memref<16x16xf32, #tpu.memory_space<vmem>>, vector<16x16xf32>
    %c0_1 = arith.constant 0 : index
    %c0_2 = arith.constant 0 : index
    %1 = vector.load %arg2[%c0_1, %c0_2] : memref<16x128xf32, #tpu.memory_space<vmem>>, vector<16x128xf32>
    %cst = arith.constant dense<0.000000e+00> : vector<16x128xf32>
    %2 = tpu.matmul %0, %1, %cst {dimension_numbers = #tpu.dot_dimension_numbers<[1], [0], [0], [1], [0, 0, 1, 1], [], []>} : vector<16x16xf32>, vector<16x128xf32>, vector<16x128xf32> -> vector<16x128xf32>
    %c0_3 = arith.constant 0 : index
    %c0_4 = arith.constant 0 : index
    %3 = vector.load %arg3[%c0_3, %c0_4] : memref<1x128xf32, #tpu.memory_space<vmem>>, vector<1x128xf32>
    %4 = vector.broadcast %3 : vector<1x128xf32> to vector<16x128xf32>
    %5 = arith.addf %2, %4 : vector<16x128xf32>
    %cst_5 = arith.constant 0.000000e+00 : f32
    %6 = vector.broadcast %cst_5 : f32 to vector<16x128xf32>
    %7 = arith.maximumf %5, %6 : vector<16x128xf32>
    %cst_6 = arith.constant dense<0.000000e+00> : vector<16xf32>
    %8 = vector.multi_reduction <add>, %7, %cst_6 [1] : vector<16x128xf32> to vector<16xf32>
    %9 = vector.shape_cast %8 : vector<16xf32> to vector<16x1xf32>
    %cst_7 = arith.constant 3.125000e-02 : f32
    %10 = vector.broadcast %cst_7 : f32 to vector<16x1xf32>
    %11 = arith.mulf %9, %10 : vector<16x1xf32>
    %12 = vector.broadcast %11 : vector<16x1xf32> to vector<16x128xf32>
    %13 = arith.subf %7, %12 : vector<16x128xf32>
    %14 = tpu.iota {dimensions = array<i32: 1>} : vector<16x128xi32>
    %c32_i32 = arith.constant 32 : i32
    %15 = vector.broadcast %c32_i32 : i32 to vector<16x128xi32>
    %16 = arith.cmpi slt, %14, %15 : vector<16x128xi32>
    %cst_8 = arith.constant 0.000000e+00 : f32
    %17 = vector.broadcast %cst_8 : f32 to vector<16x128xf32>
    %18 = arith.select %16, %13, %17 : vector<16x128xi1>, vector<16x128xf32>
    %19 = arith.mulf %18, %18 : vector<16x128xf32>
    %cst_9 = arith.constant dense<0.000000e+00> : vector<16xf32>
    %20 = vector.multi_reduction <add>, %19, %cst_9 [1] : vector<16x128xf32> to vector<16xf32>
    %21 = vector.shape_cast %20 : vector<16xf32> to vector<16x1xf32>
    %cst_10 = arith.constant 3.125000e-02 : f32
    %22 = vector.broadcast %cst_10 : f32 to vector<16x1xf32>
    %23 = arith.mulf %21, %22 : vector<16x1xf32>
    %cst_11 = arith.constant 9.99999997E-7 : f32
    %24 = vector.broadcast %cst_11 : f32 to vector<16x1xf32>
    %25 = arith.addf %23, %24 : vector<16x1xf32>
    %26 = math.rsqrt %25 : vector<16x1xf32>
    %27 = vector.broadcast %26 : vector<16x1xf32> to vector<16x128xf32>
    %28 = arith.mulf %18, %27 : vector<16x128xf32>
    %c0_12 = arith.constant 0 : index
    %c0_13 = arith.constant 0 : index
    %29 = vector.load %arg4[%c0_12, %c0_13] : memref<128x128xf32, #tpu.memory_space<vmem>>, vector<128x128xf32>
    %cst_14 = arith.constant dense<0.000000e+00> : vector<16x128xf32>
    %30 = tpu.matmul %28, %29, %cst_14 {dimension_numbers = #tpu.dot_dimension_numbers<[1], [0], [0], [1], [0, 0, 1, 1], [], []>} : vector<16x128xf32>, vector<128x128xf32>, vector<16x128xf32> -> vector<16x128xf32>
    %c0_15 = arith.constant 0 : index
    %c0_16 = arith.constant 0 : index
    %31 = vector.load %arg5[%c0_15, %c0_16] : memref<1x128xf32, #tpu.memory_space<vmem>>, vector<1x128xf32>
    %32 = vector.broadcast %31 : vector<1x128xf32> to vector<16x128xf32>
    %33 = arith.addf %30, %32 : vector<16x128xf32>
    %34 = vector.extract_strided_slice %33 {offsets = [0, 0], sizes = [16, 32], strides = [1, 1]} : vector<16x128xf32> to vector<16x32xf32>
    %c0_17 = arith.constant 0 : index
    %c0_18 = arith.constant 0 : index
    %35 = vector.load %arg6[%c0_17, %c0_18] : memref<16x32xf32, #tpu.memory_space<vmem>>, vector<16x32xf32>
    tpu.vector_store %arg6[%c0_17, %c0_18], %34 {strides = array<i32>} : memref<16x32xf32, #tpu.memory_space<vmem>>, vector<16x32xf32>,
    return
  }
  func.func @transform_0(%arg0: i32) -> (i32, i32) {
    %c0_i32 = arith.constant 0 : i32
    %c0_i32_0 = arith.constant 0 : i32
    return %arg0, %c0_i32 : i32, i32
  }
  func.func @transform_1(%arg0: i32) -> (i32, i32) {
    %c0_i32 = arith.constant 0 : i32
    %c0_i32_0 = arith.constant 0 : i32
    %c0_i32_1 = arith.constant 0 : i32
    return %c0_i32, %c0_i32_0 : i32, i32
  }
  func.func @transform_2(%arg0: i32) -> (i32, i32) {
    %c0_i32 = arith.constant 0 : i32
    %c0_i32_0 = arith.constant 0 : i32
    %c0_i32_1 = arith.constant 0 : i32
    return %c0_i32, %c0_i32_0 : i32, i32
  }
  func.func @transform_3(%arg0: i32) -> (i32, i32) {
    %c0_i32 = arith.constant 0 : i32
    %c0_i32_0 = arith.constant 0 : i32
    %c0_i32_1 = arith.constant 0 : i32
    return %c0_i32, %c0_i32_0 : i32, i32
  }
  func.func @transform_4(%arg0: i32) -> (i32, i32) {
    %c0_i32 = arith.constant 0 : i32
    %c0_i32_0 = arith.constant 0 : i32
    %c0_i32_1 = arith.constant 0 : i32
    return %c0_i32, %c0_i32_0 : i32, i32
  }
  func.func @transform_5(%arg0: i32) -> (i32, i32) {
    %c0_i32 = arith.constant 0 : i32
    %c0_i32_0 = arith.constant 0 : i32
    return %arg0, %c0_i32 : i32, i32
  }
}

</mosaic_0001>

<llo_original>
// kernel: tpu_custom_call.1
$region0: #{tpu_custom_call.1}
  #allocation0 [shape = 'u32[]', space=smem, size = 0x4, offset = 0x4, fixed_abs, tag = 'smem constant byte address 0x4 - core index']
  #allocation1 [shape = 'u32[144,128]{1,0:T(1,128)}', space=vmem, size = 0x12000, scoped, tag = 'internal scratch']
  %s0 = inlined_call_operand.hbm [shape: f32[16,16], index: 0, kind: input, shape index: {}]
  %s1 = inlined_call_operand.hbm [shape: f32[16,128], index: 1, kind: input, shape index: {}]
  %s2 = inlined_call_operand.vmem [shape: f32[1,128], index: 2, kind: input, shape index: {}]
  %s3 = inlined_call_operand.hbm [shape: f32[128,128], index: 3, kind: input, shape index: {}]
  %s4 = inlined_call_operand.vmem [shape: f32[1,128], index: 4, kind: input, shape index: {}]
  %s5 = inlined_call_operand.hbm [shape: f32[16,32], index: 5, kind: output, shape index: {}]
  %s6 = sld [smem:[#allocation0]]
  $region42: #{tpu_custom_call.1} parent=0
    _
  %s8 = ssub.s32 1, %s6
  %s9 = scalar_select 0, %s8, %s6
  $region1: #{tpu_custom_call.1} parent=0
    #allocation2 [shape = 'u8[8192]{0}', space=vmem, size = 0x2000, scoped, tag = 'input window, operand 0, single buffered']
    #allocation3 [shape = 's32[1]{0}', space=sflag, size = 0x4, scoped, tag = 'scoped memory for tpu_custom_call.1']
    #allocation4 [shape = 's32[1]{0}', space=sflag, size = 0x4, scoped, tag = 'scoped memory for tpu_custom_call.1']
    #allocation5 [shape = 'u8[8192]{0}', space=vmem, size = 0x2000, scoped, tag = 'input window, operand 1, single buffered']
    #allocation6 [shape = 's32[1]{0}', space=sflag, size = 0x4, scoped, tag = 'scoped memory for tpu_custom_call.1']
    #allocation7 [shape = 'u8[65536]{0}', space=vmem, size = 0x10000, scoped, tag = 'input window, operand 3, single buffered']
    #allocation8 [shape = 'u8[8192]{0}', space=vmem, size = 0x2000, scoped, tag = 'output window, operand 0, single buffered']
    %10 = vsyncpa [#allocation3], 0
    %11 = vsyncpa [#allocation6], 0
    %12 = vsyncpa [#allocation4], 0
    // Predicated region
    $region2: #{tpu_custom_call.1} parent=1 // pred_check
      _
    $region3: #{tpu_custom_call.1} parent=1 // pred_check_branch
      %14 = sbr.rel (0) target = $region5
    $region4: #{tpu_custom_call.1} parent=1 // pred_region
      %s16 = ssub.s32 256, 256
      %17 = vsyncadd [#allocation3], %s16
      %s18 = sshll.u32 [#allocation2], 4
      %s19 = int_to_ptr.vmem [resolvable:$true] %s18
      %24 = dma.hbm_to_vmem [thread:$0]  %s0, 256, %s19, [#allocation3], 128, 128, 8
    $region5: #{tpu_custom_call.1} parent=1 // pred_fallthru
      _
    // Predicated region
    $region6: #{tpu_custom_call.1} parent=1 // pred_check
      _
    $region7: #{tpu_custom_call.1} parent=1 // pred_check_branch
      %26 = sbr.rel (0) target = $region9
    $region8: #{tpu_custom_call.1} parent=1 // pred_region
      %s28 = ssub.s32 256, 256
      %29 = vsyncadd [#allocation6], %s28
      %s30 = sshll.u32 [#allocation5], 4
      %s31 = int_to_ptr.vmem [resolvable:$true] %s30
      %36 = dma.hbm_to_vmem [thread:$0]  %s1, 256, %s31, [#allocation6], 128, 128, 8
    $region9: #{tpu_custom_call.1} parent=1 // pred_fallthru
      _
    // Predicated region
    $region10: #{tpu_custom_call.1} parent=1 // pred_check
      _
    $region11: #{tpu_custom_call.1} parent=1 // pred_check_branch
      %38 = sbr.rel (0) target = $region13
    $region12: #{tpu_custom_call.1} parent=1 // pred_region
      _
    $region13: #{tpu_custom_call.1} parent=1 // pred_fallthru
      _
    // Predicated region
    $region14: #{tpu_custom_call.1} parent=1 // pred_check
      _
    $region15: #{tpu_custom_call.1} parent=1 // pred_check_branch
      %40 = sbr.rel (0) target = $region17
    $region16: #{tpu_custom_call.1} parent=1 // pred_region
      %s42 = ssub.s32 2048, 2048
      %43 = vsyncadd [#allocation6], %s42
      %s44 = sshll.u32 [#allocation7], 4
      %s45 = int_to_ptr.vmem [resolvable:$true] %s44
      %50 = dma.hbm_to_vmem [thread:$0]  %s3, 2048, %s45, [#allocation6], 128, 128, 8
    $region17: #{tpu_custom_call.1} parent=1 // pred_fallthru
      _
    // Predicated region
    $region18: #{tpu_custom_call.1} parent=1 // pred_check
      _
    $region19: #{tpu_custom_call.1} parent=1 // pred_check_branch
      %52 = sbr.rel (0) target = $region21
    $region20: #{tpu_custom_call.1} parent=1 // pred_region
      _
    $region21: #{tpu_custom_call.1} parent=1 // pred_fallthru
      _
    // Predicated region
    $region22: #{tpu_custom_call.1} parent=1 // pred_check
      _
    $region23: #{tpu_custom_call.1} parent=1 // pred_check_branch
      %54 = sbr.rel (0) target = $region25
    $region24: #{tpu_custom_call.1} parent=1 // pred_region
      %55 = dma.done [#allocation3], 256
    $region25: #{tpu_custom_call.1} parent=1 // pred_fallthru
      _
    // Predicated region
    $region26: #{tpu_custom_call.1} parent=1 // pred_check
      _
    $region27: #{tpu_custom_call.1} parent=1 // pred_check_branch
      %57 = sbr.rel (0) target = $region29
    $region28: #{tpu_custom_call.1} parent=1 // pred_region
      %58 = dma.done [#allocation6], 256
    $region29: #{tpu_custom_call.1} parent=1 // pred_fallthru
      _
    // Predicated region
    $region30: #{tpu_custom_call.1} parent=1 // pred_check
      _
    $region31: #{tpu_custom_call.1} parent=1 // pred_check_branch
      %60 = sbr.rel (0) target = $region33
    $region32: #{tpu_custom_call.1} parent=1 // pred_region
      %61 = dma.done [#allocation6], 2048
    $region33: #{tpu_custom_call.1} parent=1 // pred_fallthru
      _
    %v62 = vld [vmem:[#allocation2] sm:$0xff]
    %v63 = vld [vmem:[#allocation2 + $0x8] sm:$0xff]
    %v64 = vld [vmem:[#allocation5] sm:$0xff]
    %v65 = vld [vmem:[#allocation5 + $0x8] sm:$0xff]
    %v66 = vld [vmem:[%s2] sm:$0x1]
    %v68 = vlaneseq
    %v69 = vshrl.u32 %v68, 7
    %v70 = vsub.s32 0, %v69
    %v71 = vrot.slane %v66, %v70
    %vm73 = vcmask 130048
    %v75 = vsel %vm73, %v62, 0
    %v78 = vsel %vm73, %v63, 0
    %80 = vmatprep.subr.mxu0 0.0
    %81 = vmatpush1.msra.mxu0 %v64
    %82 = vmatprep.subr.mxu0 0.0
    %83 = vmatpush1.msra.mxu0 %v65
    %84 = vmatprep.subr.mxu0 0.0
    %85 = vmatpush1.msra.mxu0 0.0
    %86 = vmatprep.subr.mxu0 0.0
    %87 = vmatpush1.msra.mxu0 0.0
    %88 = vmatprep.subr.mxu0 0.0
    %89 = vmatpush1.msra.mxu0 0.0
    %90 = vmatprep.subr.mxu0 0.0
    %91 = vmatpush1.msra.mxu0 0.0
    %92 = vmatprep.subr.mxu0 0.0
    %93 = vmatpush1.msra.mxu0 0.0
    %94 = vmatprep.subr.mxu0 0.0
    %95 = vmatpush1.msra.mxu0 0.0
    %96 = vmatprep.subr.mxu0 0.0
    %97 = vmatpush1.msra.mxu0 0.0
    %98 = vmatprep.subr.mxu0 0.0
    %99 = vmatpush1.msra.mxu0 0.0
    %100 = vmatprep.subr.mxu0 0.0
    %101 = vmatpush1.msra.mxu0 0.0
    %102 = vmatprep.subr.mxu0 0.0
    %103 = vmatpush1.msra.mxu0 0.0
    %104 = vmatprep.subr.mxu0 0.0
    %105 = vmatpush1.msra.mxu0 0.0
    %106 = vmatprep.subr.mxu0 0.0
    %107 = vmatpush1.msra.mxu0 0.0
    %108 = vmatprep.subr.mxu0 0.0
    %109 = vmatpush1.msra.mxu0 0.0
    %110 = vmatprep.subr.mxu0 0.0
    %111 = vmatpush1.msra.mxu0 0.0
    %112 = vmatprep.subr.mxu0 0.0
    %113 = vmatpush1.msra.mxu0 0.0
    %114 = vmatprep.subr.mxu0 0.0
    %115 = vmatpush1.msra.mxu0 0.0
    %116 = vmatprep.subr.mxu0 0.0
    %117 = vmatpush1.msra.mxu0 0.0
    %118 = vmatprep.subr.mxu0 0.0
    %119 = vmatpush1.msra.mxu0 0.0
    %120 = vmatprep.subr.mxu0 0.0
    %121 = vmatpush1.msra.mxu0 0.0
    %122 = vmatprep.subr.mxu0 0.0
    %123 = vmatpush1.msra.mxu0 0.0
    %124 = vmatprep.subr.mxu0 0.0
    %125 = vmatpush1.msra.mxu0 0.0
    %126 = vmatprep.subr.mxu0 0.0
    %127 = vmatpush1.msra.mxu0 0.0
    %128 = vmatprep.subr.mxu0 0.0
    %129 = vmatpush1.msra.mxu0 0.0
    %130 = vmatprep.subr.mxu0 0.0
    %131 = vmatpush1.msra.mxu0 0.0
    %132 = vmatprep.subr.mxu0 0.0
    %133 = vmatpush1.msra.mxu0 0.0
    %134 = vmatprep.subr.mxu0 0.0
    %135 = vmatpush1.msra.mxu0 0.0
    %136 = vmatprep.subr.mxu0 0.0
    %137 = vmatpush1.msra.mxu0 0.0
    %138 = vmatprep.subr.mxu0 0.0
    %139 = vmatpush1.msra.mxu0 0.0
    %140 = vmatprep.subr.mxu0 0.0
    %141 = vmatpush1.msra.mxu0 0.0
    %142 = vmatprep.subr.mxu0 0.0
    %143 = vmatpush1.msra.mxu0 0.0
    %144 = vmatprep.mubr.f32.mxu0 0.0
    %145 = vmatmul.mubr.f32.gmra.mrb[0].mxu0 %v75
    %v146 = vpop.f32.mrb[0].mxu0
    %v147 = vadd.f32 %v71, %v146
    %v148 = vpop.f32.mrb[0].mxu0
    %149 = vmatprep.mubr.f32.mxu0 0.0
    %150 = vmatmul.mubr.f32.gmra.mrb[0].mxu0 %v78
    %v151 = vpop.f32.mrb[0].mxu0
    %v152 = vadd.f32 %v71, %v151
    %v153 = vpop.f32.mrb[0].mxu0
    %154 = vdwg.mxu0
    %v155 = vmax.f32 %v147, 0.0
    %v156 = vmax.f32 %v152, 0.0
    %157 = vadd.xlane.f32.xlu0 %v155
    %v158 = vpop.xlane.xlu0 %157
    %159 = vadd.xlane.f32.xlu0 %v156
    %v160 = vpop.xlane.xlu0 %159
    %v161 = vmul.f32 %v158, 0.03125
    %v162 = vmul.f32 %v160, 0.03125
    %v163 = vsub.f32 %v155, %v161
    %v164 = vsub.f32 %v156, %v162
    %v165 = vlaneseq
    %v166 = vand.u32 %v165, 127
    %vm167 = vcmp.lt.s32.totalorder %v166, 32
    %v168 = vsel %vm167, %v163, 0.0
    %v169 = vsel %vm167, %v164, 0.0
    %v170 = vmul.f32 %v168, %v168
    %v171 = vmul.f32 %v169, %v169
    %172 = vadd.xlane.f32.xlu0 %v170
    %v173 = vpop.xlane.xlu0 %172
    %174 = vadd.xlane.f32.xlu0 %v171
    %v175 = vpop.xlane.xlu0 %174
    %v176 = vmul.f32 %v173, 0.03125
    %v177 = vmul.f32 %v175, 0.03125
    %v178 = vadd.f32 %v176, 1e-06
    %v179 = vadd.f32 %v177, 1e-06
    %v180 = vrsqrt.pop %v178
    %v181 = vrsqrt.pop %v179
    %v182 = vmul.f32 %v168, %v180
    %v183 = vmul.f32 %v169, %v181
    %v184 = vld [vmem:[#allocation7] sm:$0xff]
    %v185 = vld [vmem:[#allocation7 + $0x8] sm:$0xff]
    %v186 = vld [vmem:[#allocation7 + $0x10] sm:$0xff]
    %v187 = vld [vmem:[#allocation7 + $0x18] sm:$0xff]
    %v188 = vld [vmem:[#allocation7 + $0x20] sm:$0xff]
    %v189 = vld [vmem:[#allocation7 + $0x28] sm:$0xff]
    %v190 = vld [vmem:[#allocation7 + $0x30] sm:$0xff]
    %v191 = vld [vmem:[#allocation7 + $0x38] sm:$0xff]
    %v192 = vld [vmem:[#allocation7 + $0x40] sm:$0xff]
    %v193 = vld [vmem:[#allocation7 + $0x48] sm:$0xff]
    %v194 = vld [vmem:[#allocation7 + $0x50] sm:$0xff]
    %v195 = vld [vmem:[#allocation7 + $0x58] sm:$0xff]
    %v196 = vld [vmem:[#allocation7 + $0x60] sm:$0xff]
    %v197 = vld [vmem:[#allocation7 + $0x68] sm:$0xff]
    %v198 = vld [vmem:[#allocation7 + $0x70] sm:$0xff]
    %v199 = vld [vmem:[#allocation7 + $0x78] sm:$0xff]
    %v200 = vld [vmem:[%s4] sm:$0x1]
    %v202 = vlaneseq
    %v203 = vshrl.u32 %v202, 7
    %v204 = vsub.s32 0, %v203
    %v205 = vrot.slane %v200, %v204
    %207 = vmatprep.subr.mxu0 0.0
    %208 = vmatpush1.msra.mxu0 %v184
    %209 = vmatprep.subr.mxu0 0.0
    %210 = vmatpush1.msra.mxu0 %v185
    %211 = vmatprep.subr.mxu0 0.0
    %212 = vmatpush1.msra.mxu0 %v186
    %213 = vmatprep.subr.mxu0 0.0
    %214 = vmatpush1.msra.mxu0 %v187
    %215 = vmatprep.subr.mxu0 0.0
    %216 = vmatpush1.msra.mxu0 %v188
    %217 = vmatprep.subr.mxu0 0.0
    %218 = vmatpush1.msra.mxu0 %v189
    %219 = vmatprep.subr.mxu0 0.0
    %220 = vmatpush1.msra.mxu0 %v190
    %221 = vmatprep.subr.mxu0 0.0
    %222 = vmatpush1.msra.mxu0 %v191
    %223 = vmatprep.subr.mxu0 0.0
    %224 = vmatpush1.msra.mxu0 %v192
    %225 = vmatprep.subr.mxu0 0.0
    %226 = vmatpush1.msra.mxu0 %v193
    %227 = vmatprep.subr.mxu0 0.0
    %228 = vmatpush1.msra.mxu0 %v194
    %229 = vmatprep.subr.mxu0 0.0
    %230 = vmatpush1.msra.mxu0 %v195
    %231 = vmatprep.subr.mxu0 0.0
    %232 = vmatpush1.msra.mxu0 %v196
    %233 = vmatprep.subr.mxu0 0.0
    %234 = vmatpush1.msra.mxu0 %v197
    %235 = vmatprep.subr.mxu0 0.0
    %236 = vmatpush1.msra.mxu0 %v198
    %237 = vmatprep.subr.mxu0 0.0
    %238 = vmatpush1.msra.mxu0 %v199
    %239 = vmatprep.subr.mxu0 0.0
    %240 = vmatpush1.msra.mxu0 0.0
    %241 = vmatprep.subr.mxu0 0.0
    %242 = vmatpush1.msra.mxu0 0.0
    %243 = vmatprep.subr.mxu0 0.0
    %244 = vmatpush1.msra.mxu0 0.0
    %245 = vmatprep.subr.mxu0 0.0
    %246 = vmatpush1.msra.mxu0 0.0
    %247 = vmatprep.subr.mxu0 0.0
    %248 = vmatpush1.msra.mxu0 0.0
    %249 = vmatprep.subr.mxu0 0.0
    %250 = vmatpush1.msra.mxu0 0.0
    %251 = vmatprep.subr.mxu0 0.0
    %252 = vmatpush1.msra.mxu0 0.0
    %253 = vmatprep.subr.mxu0 0.0
    %254 = vmatpush1.msra.mxu0 0.0
    %255 = vmatprep.subr.mxu0 0.0
    %256 = vmatpush1.msra.mxu0 0.0
    %257 = vmatprep.subr.mxu0 0.0
    %258 = vmatpush1.msra.mxu0 0.0
    %259 = vmatprep.subr.mxu0 0.0
    %260 = vmatpush1.msra.mxu0 0.0
    %261 = vmatprep.subr.mxu0 0.0
    %262 = vmatpush1.msra.mxu0 0.0
    %263 = vmatprep.subr.mxu0 0.0
    %264 = vmatpush1.msra.mxu0 0.0
    %265 = vmatprep.subr.mxu0 0.0
    %266 = vmatpush1.msra.mxu0 0.0
    %267 = vmatprep.subr.mxu0 0.0
    %268 = vmatpush1.msra.mxu0 0.0
    %269 = vmatprep.subr.mxu0 0.0
    %270 = vmatpush1.msra.mxu0 0.0
    %271 = vmatprep.mubr.f32.mxu0 0.0
    %272 = vmatmul.mubr.f32.gmra.mrb[0].mxu0 %v182
    %v273 = vpop.f32.mrb[0].mxu0
    %v274 = vadd.f32 %v205, %v273
    %v275 = vpop.f32.mrb[0].mxu0
    %276 = vmatprep.mubr.f32.mxu0 0.0
    %277 = vmatmul.mubr.f32.gmra.mrb[0].mxu0 %v183
    %v278 = vpop.f32.mrb[0].mxu0
    %v279 = vadd.f32 %v205, %v278
    %v280 = vpop.f32.mrb[0].mxu0
    %281 = vdwg.mxu0
    %vm282 = vcmask 261120
    %283 = vst.msk [vmem:[#allocation8] sm:$0xff] %vm282, %v274
    %284 = vst.msk [vmem:[#allocation8 + $0x8] sm:$0xff] %vm282, %v279
    // Predicated region
    $region34: #{tpu_custom_call.1} parent=1 // pred_check
      _
    $region35: #{tpu_custom_call.1} parent=1 // pred_check_branch
      %286 = sbr.rel (0) target = $region37
    $region36: #{tpu_custom_call.1} parent=1 // pred_region
      %s288 = ssub.s32 256, 256
      %289 = vsyncadd [#allocation4], %s288
      %s290 = sshll.u32 [#allocation8], 4
      %s291 = int_to_ptr.vmem [resolvable:$true] %s290
      %296 = dma.vmem_to_hbm [thread:$0]  %s291, 256, %s5, [#allocation4], 128, 128, 8
    $region37: #{tpu_custom_call.1} parent=1 // pred_fallthru
      _
    // Predicated region
    $region38: #{tpu_custom_call.1} parent=1 // pred_check
      _
    $region39: #{tpu_custom_call.1} parent=1 // pred_check_branch
      %298 = sbr.rel (0) target = $region41
    $region40: #{tpu_custom_call.1} parent=1 // pred_region
      %299 = dma.done [#allocation4], 256
    $region41: #{tpu_custom_call.1} parent=1 // pred_fallthru
      _
    %300 = vsyncpa [#allocation3], 1
    %301 = vsyncpa [#allocation6], 1
    %302 = vsyncpa [#allocation4], 1

// kernel: tpu_custom_call.1
$region0: #{tpu_custom_call.1}
  #allocation0 [shape = 'u32[]', space=smem, size = 0x4, offset = 0x4, fixed_abs, tag = 'smem constant byte address 0x4 - core index']
  #allocation1 [shape = 'u32[144,128]{1,0:T(1,128)}', space=vmem, size = 0x12000, scoped, tag = 'internal scratch']
  %s0 = inlined_call_operand.hbm [shape: f32[16,16], index: 0, kind: input, shape index: {}]
  %s1 = inlined_call_operand.hbm [shape: f32[16,128], index: 1, kind: input, shape index: {}]
  %s2 = inlined_call_operand.vmem [shape: f32[1,128], index: 2, kind: input, shape index: {}]
  %s3 = inlined_call_operand.hbm [shape: f32[128,128], index: 3, kind: input, shape index: {}]
  %s4 = inlined_call_operand.vmem [shape: f32[1,128], index: 4, kind: input, shape index: {}]
  %s5 = inlined_call_operand.hbm [shape: f32[16,32], index: 5, kind: output, shape index: {}]
  %s6 = sld [smem:[#allocation0]]
  $region42: #{tpu_custom_call.1} parent=0
    _
  %s8 = ssub.s32 1, %s6
  %s9 = scalar_select 0, %s8, %s6
  $region1: #{tpu_custom_call.1} parent=0
    #allocation2 [shape = 'u8[8192]{0}', space=vmem, size = 0x2000, scoped, tag = 'input window, operand 0, single buffered']
    #allocation3 [shape = 's32[1]{0}', space=sflag, size = 0x4, scoped, tag = 'scoped memory for tpu_custom_call.1']
    #allocation4 [shape = 's32[1]{0}', space=sflag, size = 0x4, scoped, tag = 'scoped memory for tpu_custom_call.1']
    #allocation5 [shape = 'u8[8192]{0}', space=vmem, size = 0x2000, scoped, tag = 'input window, operand 1, single buffered']
    #allocation6 [shape = 's32[1]{0}', space=sflag, size = 0x4, scoped, tag = 'scoped memory for tpu_custom_call.1']
    #allocation7 [shape = 'u8[65536]{0}', space=vmem, size = 0x10000, scoped, tag = 'input window, operand 3, single buffered']
    #allocation8 [shape = 'u8[8192]{0}', space=vmem, size = 0x2000, scoped, tag = 'output window, operand 0, single buffered']
    %10 = vsyncpa [#allocation3], 0
    %11 = vsyncpa [#allocation6], 0
    %12 = vsyncpa [#allocation4], 0
    // Predicated region
    $region2: #{tpu_custom_call.1} parent=1 // pred_check
      _
    $region3: #{tpu_custom_call.1} parent=1 // pred_check_branch
      %14 = sbr.rel (0) target = $region5
    $region4: #{tpu_custom_call.1} parent=1 // pred_region
      %s16 = ssub.s32 256, 256
      %17 = vsyncadd [#allocation3], %s16
      %s18 = sshll.u32 [#allocation2], 4
      %s19 = int_to_ptr.vmem [resolvable:$true] %s18
      %24 = dma.hbm_to_vmem [thread:$0]  %s0, 256, %s19, [#allocation3], 128, 128, 8
    $region5: #{tpu_custom_call.1} parent=1 // pred_fallthru
      _
    // Predicated region
    $region6: #{tpu_custom_call.1} parent=1 // pred_check
      _
    $region7: #{tpu_custom_call.1} parent=1 // pred_check_branch
      %26 = sbr.rel (0) target = $region9
    $region8: #{tpu_custom_call.1} parent=1 // pred_region
      %s28 = ssub.s32 256, 256
      %29 = vsyncadd [#allocation6], %s28
      %s30 = sshll.u32 [#allocation5], 4
      %s31 = int_to_ptr.vmem [resolvable:$true] %s30
      %36 = dma.hbm_to_vmem [thread:$0]  %s1, 256, %s31, [#allocation6], 128, 128, 8
    $region9: #{tpu_custom_call.1} parent=1 // pred_fallthru
      _
    // Predicated region
    $region10: #{tpu_custom_call.1} parent=1 // pred_check
      _
    $region11: #{tpu_custom_call.1} parent=1 // pred_check_branch
      %38 = sbr.rel (0) target = $region13
    $region12: #{tpu_custom_call.1} parent=1 // pred_region
      _
    $region13: #{tpu_custom_call.1} parent=1 // pred_fallthru
      _
    // Predicated region
    $region14: #{tpu_custom_call.1} parent=1 // pred_check
      _
    $region15: #{tpu_custom_call.1} parent=1 // pred_check_branch
      %40 = sbr.rel (0) target = $region17
    $region16: #{tpu_custom_call.1} parent=1 // pred_region
      %s42 = ssub.s32 2048, 2048
      %43 = vsyncadd [#allocation6], %s42
      %s44 = sshll.u32 [#allocation7], 4
      %s45 = int_to_ptr.vmem [resolvable:$true] %s44
      %50 = dma.hbm_to_vmem [thread:$0]  %s3, 2048, %s45, [#allocation6], 128, 128, 8
    $region17: #{tpu_custom_call.1} parent=1 // pred_fallthru
      _
    // Predicated region
    $region18: #{tpu_custom_call.1} parent=1 // pred_check
      _
    $region19: #{tpu_custom_call.1} parent=1 // pred_check_branch
      %52 = sbr.rel (0) target = $region21
    $region20: #{tpu_custom_call.1} parent=1 // pred_region
      _
    $region21: #{tpu_custom_call.1} parent=1 // pred_fallthru
      _
    // Predicated region
    $region22: #{tpu_custom_call.1} parent=1 // pred_check
      _
    $region23: #{tpu_custom_call.1} parent=1 // pred_check_branch
      %54 = sbr.rel (0) target = $region25
    $region24: #{tpu_custom_call.1} parent=1 // pred_region
      %55 = dma.done [#allocation3], 256
    $region25: #{tpu_custom_call.1} parent=1 // pred_fallthru
      _
    // Predicated region
    $region26: #{tpu_custom_call.1} parent=1 // pred_check
      _
    $region27: #{tpu_custom_call.1} parent=1 // pred_check_branch
      %57 = sbr.rel (0) target = $region29
    $region28: #{tpu_custom_call.1} parent=1 // pred_region
      %58 = dma.done [#allocation6], 256
    $region29: #{tpu_custom_call.1} parent=1 // pred_fallthru
      _
    // Predicated region
    $region30: #{tpu_custom_call.1} parent=1 // pred_check
      _
    $region31: #{tpu_custom_call.1} parent=1 // pred_check_branch
      %60 = sbr.rel (0) target = $region33
    $region32: #{tpu_custom_call.1} parent=1 // pred_region
      %61 = dma.done [#allocation6], 2048
    $region33: #{tpu_custom_call.1} parent=1 // pred_fallthru
      _
    %v62 = vld [vmem:[#allocation2] sm:$0xff]
    %v63 = vld [vmem:[#allocation2 + $0x8] sm:$0xff]
    %v64 = vld [vmem:[#allocation5] sm:$0xff]
    %v65 = vld [vmem:[#allocation5 + $0x8] sm:$0xff]
    %v66 = vld [vmem:[%s2] sm:$0x1]
    %v68 = vlaneseq
    %v69 = vshrl.u32 %v68, 7
    %v70 = vsub.s32 0, %v69
    %v71 = vrot.slane %v66, %v70
    %vm73 = vcmask 130048
    %v75 = vsel %vm73, %v62, 0
    %v78 = vsel %vm73, %v63, 0
    %80 = vmatprep.subr.mxu0 0.0
    %81 = vmatpush1.msra.mxu0 %v64
    %82 = vmatprep.subr.mxu0 0.0
    %83 = vmatpush1.msra.mxu0 %v65
    %84 = vmatprep.subr.mxu0 0.0
    %85 = vmatpush1.msra.mxu0 0.0
    %86 = vmatprep.subr.mxu0 0.0
    %87 = vmatpush1.msra.mxu0 0.0
    %88 = vmatprep.subr.mxu0 0.0
    %89 = vmatpush1.msra.mxu0 0.0
    %90 = vmatprep.subr.mxu0 0.0
    %91 = vmatpush1.msra.mxu0 0.0
    %92 = vmatprep.subr.mxu0 0.0
    %93 = vmatpush1.msra.mxu0 0.0
    %94 = vmatprep.subr.mxu0 0.0
    %95 = vmatpush1.msra.mxu0 0.0
    %96 = vmatprep.subr.mxu0 0.0
    %97 = vmatpush1.msra.mxu0 0.0
    %98 = vmatprep.subr.mxu0 0.0
    %99 = vmatpush1.msra.mxu0 0.0
    %100 = vmatprep.subr.mxu0 0.0
    %101 = vmatpush1.msra.mxu0 0.0
    %102 = vmatprep.subr.mxu0 0.0
    %103 = vmatpush1.msra.mxu0 0.0
    %104 = vmatprep.subr.mxu0 0.0
    %105 = vmatpush1.msra.mxu0 0.0
    %106 = vmatprep.subr.mxu0 0.0
    %107 = vmatpush1.msra.mxu0 0.0
    %108 = vmatprep.subr.mxu0 0.0
    %109 = vmatpush1.msra.mxu0 0.0
    %110 = vmatprep.subr.mxu0 0.0
    %111 = vmatpush1.msra.mxu0 0.0
    %112 = vmatprep.subr.mxu0 0.0
    %113 = vmatpush1.msra.mxu0 0.0
    %114 = vmatprep.subr.mxu0 0.0
    %115 = vmatpush1.msra.mxu0 0.0
    %116 = vmatprep.subr.mxu0 0.0
    %117 = vmatpush1.msra.mxu0 0.0
    %118 = vmatprep.subr.mxu0 0.0
    %119 = vmatpush1.msra.mxu0 0.0
    %120 = vmatprep.subr.mxu0 0.0
    %121 = vmatpush1.msra.mxu0 0.0
    %122 = vmatprep.subr.mxu0 0.0
    %123 = vmatpush1.msra.mxu0 0.0
    %124 = vmatprep.subr.mxu0 0.0
    %125 = vmatpush1.msra.mxu0 0.0
    %126 = vmatprep.subr.mxu0 0.0
    %127 = vmatpush1.msra.mxu0 0.0
    %128 = vmatprep.subr.mxu0 0.0
    %129 = vmatpush1.msra.mxu0 0.0
    %130 = vmatprep.subr.mxu0 0.0
    %131 = vmatpush1.msra.mxu0 0.0
    %132 = vmatprep.subr.mxu0 0.0
    %133 = vmatpush1.msra.mxu0 0.0
    %134 = vmatprep.subr.mxu0 0.0
    %135 = vmatpush1.msra.mxu0 0.0
    %136 = vmatprep.subr.mxu0 0.0
    %137 = vmatpush1.msra.mxu0 0.0
    %138 = vmatprep.subr.mxu0 0.0
    %139 = vmatpush1.msra.mxu0 0.0
    %140 = vmatprep.subr.mxu0 0.0
    %141 = vmatpush1.msra.mxu0 0.0
    %142 = vmatprep.subr.mxu0 0.0
    %143 = vmatpush1.msra.mxu0 0.0
    %144 = vmatprep.mubr.f32.mxu0 0.0
    %145 = vmatmul.mubr.f32.gmra.mrb[0].mxu0 %v75
    %v146 = vpop.f32.mrb[0].mxu0
    %v147 = vadd.f32 %v71, %v146
    %v148 = vpop.f32.mrb[0].mxu0
    %149 = vmatprep.mubr.f32.mxu0 0.0
    %150 = vmatmul.mubr.f32.gmra.mrb[0].mxu0 %v78
    %v151 = vpop.f32.mrb[0].mxu0
    %v152 = vadd.f32 %v71, %v151
    %v153 = vpop.f32.mrb[0].mxu0
    %154 = vdwg.mxu0
    %v155 = vmax.f32 %v147, 0.0
    %v156 = vmax.f32 %v152, 0.0
    %157 = vadd.xlane.f32.xlu0 %v155
    %v158 = vpop.xlane.xlu0 %157
    %159 = vadd.xlane.f32.xlu0 %v156
    %v160 = vpop.xlane.xlu0 %159
    %v161 = vmul.f32 %v158, 0.03125
    %v162 = vmul.f32 %v160, 0.03125
    %v163 = vsub.f32 %v155, %v161
    %v164 = vsub.f32 %v156, %v162
    %v165 = vlaneseq
    %v166 = vand.u32 %v165, 127
    %vm167 = vcmp.lt.s32.totalorder %v166, 32
    %v168 = vsel %vm167, %v163, 0.0
    %v169 = vsel %vm167, %v164, 0.0
    %v170 = vmul.f32 %v168, %v168
    %v171 = vmul.f32 %v169, %v169
    %172 = vadd.xlane.f32.xlu0 %v170
    %v173 = vpop.xlane.xlu0 %172
    %174 = vadd.xlane.f32.xlu0 %v171
    %v175 = vpop.xlane.xlu0 %174
    %v176 = vmul.f32 %v173, 0.03125
    %v177 = vmul.f32 %v175, 0.03125
    %v178 = vadd.f32 %v176, 1e-06
    %v179 = vadd.f32 %v177, 1e-06
    %v180 = vrsqrt.pop %v178
    %v181 = vrsqrt.pop %v179
    %v182 = vmul.f32 %v168, %v180
    %v183 = vmul.f32 %v169, %v181
    %v184 = vld [vmem:[#allocation7] sm:$0xff]
    %v185 = vld [vmem:[#allocation7 + $0x8] sm:$0xff]
    %v186 = vld [vmem:[#allocation7 + $0x10] sm:$0xff]
    %v187 = vld [vmem:[#allocation7 + $0x18] sm:$0xff]
    %v188 = vld [vmem:[#allocation7 + $0x20] sm:$0xff]
    %v189 = vld [vmem:[#allocation7 + $0x28] sm:$0xff]
    %v190 = vld [vmem:[#allocation7 + $0x30] sm:$0xff]
    %v191 = vld [vmem:[#allocation7 + $0x38] sm:$0xff]
    %v192 = vld [vmem:[#allocation7 + $0x40] sm:$0xff]
    %v193 = vld [vmem:[#allocation7 + $0x48] sm:$0xff]
    %v194 = vld [vmem:[#allocation7 + $0x50] sm:$0xff]
    %v195 = vld [vmem:[#allocation7 + $0x58] sm:$0xff]
    %v196 = vld [vmem:[#allocation7 + $0x60] sm:$0xff]
    %v197 = vld [vmem:[#allocation7 + $0x68] sm:$0xff]
    %v198 = vld [vmem:[#allocation7 + $0x70] sm:$0xff]
    %v199 = vld [vmem:[#allocation7 + $0x78] sm:$0xff]
    %v200 = vld [vmem:[%s4] sm:$0x1]
    %v202 = vlaneseq
    %v203 = vshrl.u32 %v202, 7
    %v204 = vsub.s32 0, %v203
    %v205 = vrot.slane %v200, %v204
    %207 = vmatprep.subr.mxu0 0.0
    %208 = vmatpush1.msra.mxu0 %v184
    %209 = vmatprep.subr.mxu0 0.0
    %210 = vmatpush1.msra.mxu0 %v185
    %211 = vmatprep.subr.mxu0 0.0
    %212 = vmatpush1.msra.mxu0 %v186
    %213 = vmatprep.subr.mxu0 0.0
    %214 = vmatpush1.msra.mxu0 %v187
    %215 = vmatprep.subr.mxu0 0.0
    %216 = vmatpush1.msra.mxu0 %v188
    %217 = vmatprep.subr.mxu0 0.0
    %218 = vmatpush1.msra.mxu0 %v189
    %219 = vmatprep.subr.mxu0 0.0
    %220 = vmatpush1.msra.mxu0 %v190
    %221 = vmatprep.subr.mxu0 0.0
    %222 = vmatpush1.msra.mxu0 %v191
    %223 = vmatprep.subr.mxu0 0.0
    %224 = vmatpush1.msra.mxu0 %v192
    %225 = vmatprep.subr.mxu0 0.0
    %226 = vmatpush1.msra.mxu0 %v193
    %227 = vmatprep.subr.mxu0 0.0
    %228 = vmatpush1.msra.mxu0 %v194
    %229 = vmatprep.subr.mxu0 0.0
    %230 = vmatpush1.msra.mxu0 %v195
    %231 = vmatprep.subr.mxu0 0.0
    %232 = vmatpush1.msra.mxu0 %v196
    %233 = vmatprep.subr.mxu0 0.0
    %234 = vmatpush1.msra.mxu0 %v197
    %235 = vmatprep.subr.mxu0 0.0
    %236 = vmatpush1.msra.mxu0 %v198
    %237 = vmatprep.subr.mxu0 0.0
    %238 = vmatpush1.msra.mxu0 %v199
    %239 = vmatprep.subr.mxu0 0.0
    %240 = vmatpush1.msra.mxu0 0.0
    %241 = vmatprep.subr.mxu0 0.0
    %242 = vmatpush1.msra.mxu0 0.0
    %243 = vmatprep.subr.mxu0 0.0
    %244 = vmatpush1.msra.mxu0 0.0
    %245 = vmatprep.subr.mxu0 0.0
    %246 = vmatpush1.msra.mxu0 0.0
    %247 = vmatprep.subr.mxu0 0.0
    %248 = vmatpush1.msra.mxu0 0.0
    %249 = vmatprep.subr.mxu0 0.0
    %250 = vmatpush1.msra.mxu0 0.0
    %251 = vmatprep.subr.mxu0 0.0
    %252 = vmatpush1.msra.mxu0 0.0
    %253 = vmatprep.subr.mxu0 0.0
    %254 = vmatpush1.msra.mxu0 0.0
    %255 = vmatprep.subr.mxu0 0.0
    %256 = vmatpush1.msra.mxu0 0.0
    %257 = vmatprep.subr.mxu0 0.0
    %258 = vmatpush1.msra.mxu0 0.0
    %259 = vmatprep.subr.mxu0 0.0
    %260 = vmatpush1.msra.mxu0 0.0
    %261 = vmatprep.subr.mxu0 0.0
    %262 = vmatpush1.msra.mxu0 0.0
    %263 = vmatprep.subr.mxu0 0.0
    %264 = vmatpush1.msra.mxu0 0.0
    %265 = vmatprep.subr.mxu0 0.0
    %266 = vmatpush1.msra.mxu0 0.0
    %267 = vmatprep.subr.mxu0 0.0
    %268 = vmatpush1.msra.mxu0 0.0
    %269 = vmatprep.subr.mxu0 0.0
    %270 = vmatpush1.msra.mxu0 0.0
    %271 = vmatprep.mubr.f32.mxu0 0.0
    %272 = vmatmul.mubr.f32.gmra.mrb[0].mxu0 %v182
    %v273 = vpop.f32.mrb[0].mxu0
    %v274 = vadd.f32 %v205, %v273
    %v275 = vpop.f32.mrb[0].mxu0
    %276 = vmatprep.mubr.f32.mxu0 0.0
    %277 = vmatmul.mubr.f32.gmra.mrb[0].mxu0 %v183
    %v278 = vpop.f32.mrb[0].mxu0
    %v279 = vadd.f32 %v205, %v278
    %v280 = vpop.f32.mrb[0].mxu0
    %281 = vdwg.mxu0
    %vm282 = vcmask 261120
    %283 = vst.msk [vmem:[#allocation8] sm:$0xff] %vm282, %v274
    %284 = vst.msk [vmem:[#allocation8 + $0x8] sm:$0xff] %vm282, %v279
    // Predicated region
    $region34: #{tpu_custom_call.1} parent=1 // pred_check
      _
    $region35: #{tpu_custom_call.1} parent=1 // pred_check_branch
      %286 = sbr.rel (0) target = $region37
    $region36: #{tpu_custom_call.1} parent=1 // pred_region
      %s288 = ssub.s32 256, 256
      %289 = vsyncadd [#allocation4], %s288
      %s290 = sshll.u32 [#allocation8], 4
      %s291 = int_to_ptr.vmem [resolvable:$true] %s290
      %296 = dma.vmem_to_hbm [thread:$0]  %s291, 256, %s5, [#allocation4], 128, 128, 8
    $region37: #{tpu_custom_call.1} parent=1 // pred_fallthru
      _
    // Predicated region
    $region38: #{tpu_custom_call.1} parent=1 // pred_check
      _
    $region39: #{tpu_custom_call.1} parent=1 // pred_check_branch
      %298 = sbr.rel (0) target = $region41
    $region40: #{tpu_custom_call.1} parent=1 // pred_region
      %299 = dma.done [#allocation4], 256
    $region41: #{tpu_custom_call.1} parent=1 // pred_fallthru
      _
    %300 = vsyncpa [#allocation3], 1
    %301 = vsyncpa [#allocation6], 1
    %302 = vsyncpa [#allocation4], 1

</llo_original>
